<compile_context>
chip_gen: v7x
topology: tpu7x:2x2x1
jax: 0.10.0
libtpu: 0.0.40
codegen_flags: <defaults>
</compile_context>

<pallas_src>
import jax
import jax.numpy as jnp
from jax import lax
from jax.experimental import pallas as pl
from jax.experimental.pallas import tpu as pltpu


def _round_up(n, m):
    return ((n + m - 1) // m) * m


def _mlp_kernel(x_ref, w1_ref, b1_ref, w2t_ref, b2_ref, w3_ref, b3_ref, o_ref):
    # x_ref: (TB, 39) batch-major tile, streamed straight from the natural layout.
    x = x_ref[...]

    # Layer 1 (39 -> 25), the only MXU matmul: h1t = tanh(w1 @ x^T + b1).
    # Contraction over the lane dim of both operands (A @ B^T pattern) so the
    # result lands feature-major (25, TB) with batch on the lane axis.
    h1t = jnp.tanh(
        lax.dot_general(
            w1_ref[...], x,
            dimension_numbers=(((1,), (1,)), ((), ())),
            preferred_element_type=jnp.float32,
        )
        + b1_ref[...]
    )  # (25, TB)

    # Layer 2 (25 -> 2): VPU broadcast-multiply + sublane (XLU) reduce; no MXU
    # round-trip for a tiny-N matmul.
    w2t = w2t_ref[...]  # (25, 2)
    h2_0 = jnp.tanh(
        jnp.sum(w2t[:, 0:1] * h1t, axis=0, keepdims=True) + b2_ref[0:1, :]
    )  # (1, TB)
    h2_1 = jnp.tanh(
        jnp.sum(w2t[:, 1:2] * h1t, axis=0, keepdims=True) + b2_ref[1:2, :]
    )  # (1, TB)

    # Output layer (2 -> 1): pure VPU FMAs + EUP exp; lane-dense (1, TB) store.
    z = h2_0 * w3_ref[:, 0:1] + h2_1 * w3_ref[:, 1:2] + b3_ref[...]
    o_ref[...] = jnp.exp(z).astype(o_ref.dtype)


def multiple_regression_forward(x, params):
    """Forward pass of MultipleRegression. x: (B, num_features) f32 -> (B, 1) f32."""
    w1, b1, w2, b2, w3, b3 = params  # PyTorch layout: w (out, in); b stored as (out, 1)
    B, F = x.shape

    # Batch tiling: keep tiles <= 2048 rows (VMEM headroom even at the v5e 16 MiB
    # scoped default with double-buffering), lane-aligned to 128, and sized from
    # the tile count so zero-padding waste stays small for awkward batch sizes.
    TB_MAX = 2048
    ntiles = max(1, (B + TB_MAX - 1) // TB_MAX)
    TB = _round_up(max(1, (B + ntiles - 1) // ntiles), 128)
    Bp = ntiles * TB

    # Zero-pad the batch remainder (zeros -> finite math; padded columns are
    # sliced off below). No transpose: x stays in its natural (B, F) layout.
    if Bp != B:
        x = jnp.pad(x, ((0, Bp - B), (0, 0)))

    w2t = w2.T  # (25, 2): avoids any in-kernel transpose for the VPU layer-2 path.

    const_spec = lambda shp: pl.BlockSpec(shp, lambda i: (0, 0))

    out = pl.pallas_call(
        _mlp_kernel,
        out_shape=jax.ShapeDtypeStruct((1, Bp), jnp.float32),
        grid=(Bp // TB,),
        in_specs=[
            pl.BlockSpec((TB, F), lambda i: (i, 0)),  # streamed batch tiles (natural layout)
            const_spec(w1.shape),   # (25, 39) VMEM-resident across grid steps
            const_spec(b1.shape),   # (25, 1)
            const_spec(w2t.shape),  # (25, 2)
            const_spec(b2.shape),   # (2, 1)
            const_spec(w3.shape),   # (1, 2)
            const_spec(b3.shape),   # (1, 1)
        ],
        out_specs=pl.BlockSpec((1, TB), lambda i: (0, i)),  # lane-dense output slab
        compiler_params=pltpu.CompilerParams(
            dimension_semantics=("parallel",),
        ),
    )(x, w1, b1, w2t, b2, w3, b3)

    return out[0, :B].reshape(B, 1)


def xavier_uniform(key, fan_out, fan_in):
    # Same distribution as torch.nn.init.xavier_uniform_ (gain=1) on a (out, in) weight.
    bound = jnp.sqrt(6.0 / (fan_in + fan_out))
    return jax.random.uniform(
        key, (fan_out, fan_in), dtype=jnp.float32, minval=-bound, maxval=bound
    )


def init_params(key, num_features=39, num_units_1=25, num_units_2=2):
    k1, k2, k3 = jax.random.split(key, 3)
    # PyTorch nn.Linear layout: weight (out_features, in_features); biases zero-init.
    w1 = xavier_uniform(k1, num_units_1, num_features)   # (25, 39)
    b1 = jnp.zeros((num_units_1, 1), jnp.float32)
    w2 = xavier_uniform(k2, num_units_2, num_units_1)    # (2, 25)
    b2 = jnp.zeros((num_units_2, 1), jnp.float32)
    w3 = xavier_uniform(k3, 1, num_units_2)               # (1, 2)
    b3 = jnp.zeros((1, 1), jnp.float32)
    return (w1, b1, w2, b2, w3, b3)


def reference_forward(x, params):
    w1, b1, w2, b2, w3, b3 = params
    h1 = jnp.tanh(x @ w1.T + b1[:, 0])
    h2 = jnp.tanh(h1 @ w2.T + b2[:, 0])
    return jnp.exp(h2 @ w3.T + b3[:, 0])


if __name__ == "__main__":
    key = jax.random.PRNGKey(0)
    pkey, xkey1, xkey2 = jax.random.split(key, 3)

    num_features = 39
    params = init_params(pkey, num_features=num_features, num_units_1=25, num_units_2=2)

    # Small primary check (batch=8): single grid step, padded to one 128-lane tile.
    x_small = jax.random.normal(xkey1, (8, num_features), dtype=jnp.float32)
    out_small = jax.block_until_ready(multiple_regression_forward(x_small, params))
    ref_small = reference_forward(x_small, params)
    assert out_small.shape == (8, 1)
    assert jnp.allclose(out_small, ref_small, rtol=1e-4, atol=1e-5), "mismatch (B=8)"

    # Secondary check exercising a multi-step grid + batch-remainder padding.
    x_big = jax.random.normal(xkey2, (2500, num_features), dtype=jnp.float32)
    out_big = jax.block_until_ready(multiple_regression_forward(x_big, params))
    ref_big = reference_forward(x_big, params)
    assert out_big.shape == (2500, 1)
    assert jnp.allclose(out_big, ref_big, rtol=1e-4, atol=1e-5), "mismatch (B=2500)"

    print("KERNEL_OK")
</pallas_src>

<mosaic_0001>
module attributes {stable_mosaic.version = 11 : i64} {
  func.func @_mlp_kernel(%arg0: i32, %arg1: memref<128x39xf32, #tpu.memory_space<vmem>>, %arg2: memref<25x39xf32, #tpu.memory_space<vmem>>, %arg3: memref<25x1xf32, #tpu.memory_space<vmem>>, %arg4: memref<25x2xf32, #tpu.memory_space<vmem>>, %arg5: memref<2x1xf32, #tpu.memory_space<vmem>>, %arg6: memref<1x2xf32, #tpu.memory_space<vmem>>, %arg7: memref<1x1xf32, #tpu.memory_space<vmem>>, %arg8: memref<1x128xf32, #tpu.memory_space<vmem>>) attributes {dimension_semantics = [#tpu.dimension_semantics<parallel>], iteration_bounds = array<i64: 1>, scalar_prefetch = 0 : i64, scratch_operands = 0 : i64, tpu.core_type = #tpu.core_type<tc>, window_params = [{transform_indices = @transform_0, window_bounds = array<i64: 128, 39>}, {pipeline_mode = #tpu.pipeline_mode<synchronous>, transform_indices = @transform_1, window_bounds = array<i64: 25, 39>}, {pipeline_mode = #tpu.pipeline_mode<synchronous>, transform_indices = @transform_2, window_bounds = array<i64: 25, 1>}, {pipeline_mode = #tpu.pipeline_mode<synchronous>, transform_indices = @transform_3, window_bounds = array<i64: 25, 2>}, {pipeline_mode = #tpu.pipeline_mode<synchronous>, transform_indices = @transform_4, window_bounds = array<i64: 2, 1>}, {pipeline_mode = #tpu.pipeline_mode<synchronous>, transform_indices = @transform_5, window_bounds = array<i64: 1, 2>}, {pipeline_mode = #tpu.pipeline_mode<synchronous>, transform_indices = @transform_6, window_bounds = array<i64: 1, 1>}, {transform_indices = @transform_7, window_bounds = array<i64: 1, 128>}]} {
    %c0 = arith.constant 0 : index
    %c0_0 = arith.constant 0 : index
    %0 = vector.load %arg1[%c0, %c0_0] : memref<128x39xf32, #tpu.memory_space<vmem>>, vector<128x39xf32>
    %c0_1 = arith.constant 0 : index
    %c0_2 = arith.constant 0 : index
    %1 = vector.load %arg2[%c0_1, %c0_2] : memref<25x39xf32, #tpu.memory_space<vmem>>, vector<25x39xf32>
    %cst = arith.constant dense<0.000000e+00> : vector<25x128xf32>
    %2 = tpu.matmul %1, %0, %cst {dimension_numbers = #tpu.dot_dimension_numbers<[1], [1], [0], [0], [0, 0, 1, 0], [], []>} : vector<25x39xf32>, vector<128x39xf32>, vector<25x128xf32> -> vector<25x128xf32>
    %c0_3 = arith.constant 0 : index
    %c0_4 = arith.constant 0 : index
    %3 = vector.load %arg3[%c0_3, %c0_4] : memref<25x1xf32, #tpu.memory_space<vmem>>, vector<25x1xf32>
    %4 = vector.broadcast %3 : vector<25x1xf32> to vector<25x128xf32>
    %5 = arith.addf %2, %4 : vector<25x128xf32>
    %6 = math.tanh %5 : vector<25x128xf32>
    %c0_5 = arith.constant 0 : index
    %c0_6 = arith.constant 0 : index
    %7 = vector.load %arg4[%c0_5, %c0_6] : memref<25x2xf32, #tpu.memory_space<vmem>>, vector<25x2xf32>
    %8 = vector.extract_strided_slice %7 {offsets = [0, 0], sizes = [25, 1], strides = [1, 1]} : vector<25x2xf32> to vector<25x1xf32>
    %9 = vector.broadcast %8 : vector<25x1xf32> to vector<25x128xf32>
    %10 = arith.mulf %9, %6 : vector<25x128xf32>
    %cst_7 = arith.constant dense<0.000000e+00> : vector<128xf32>
    %11 = vector.multi_reduction <add>, %10, %cst_7 [0] : vector<25x128xf32> to vector<128xf32>
    %12 = vector.shape_cast %11 : vector<128xf32> to vector<1x128xf32>
    %c0_8 = arith.constant 0 : index
    %c0_9 = arith.constant 0 : index
    %13 = vector.load %arg5[%c0_8, %c0_9] : memref<2x1xf32, #tpu.memory_space<vmem>>, vector<1x1xf32>
    %14 = vector.broadcast %13 : vector<1x1xf32> to vector<1x128xf32>
    %15 = arith.addf %12, %14 : vector<1x128xf32>
    %16 = math.tanh %15 : vector<1x128xf32>
    %17 = vector.extract_strided_slice %7 {offsets = [0, 1], sizes = [25, 1], strides = [1, 1]} : vector<25x2xf32> to vector<25x1xf32>
    %18 = vector.broadcast %17 : vector<25x1xf32> to vector<25x128xf32>
    %19 = arith.mulf %18, %6 : vector<25x128xf32>
    %cst_10 = arith.constant dense<0.000000e+00> : vector<128xf32>
    %20 = vector.multi_reduction <add>, %19, %cst_10 [0] : vector<25x128xf32> to vector<128xf32>
    %21 = vector.shape_cast %20 : vector<128xf32> to vector<1x128xf32>
    %c1 = arith.constant 1 : index
    %c0_11 = arith.constant 0 : index
    %22 = vector.load %arg5[%c1, %c0_11] : memref<2x1xf32, #tpu.memory_space<vmem>>, vector<1x1xf32>
    %23 = vector.broadcast %22 : vector<1x1xf32> to vector<1x128xf32>
    %24 = arith.addf %21, %23 : vector<1x128xf32>
    %25 = math.tanh %24 : vector<1x128xf32>
    %c0_12 = arith.constant 0 : index
    %c0_13 = arith.constant 0 : index
    %26 = vector.load %arg6[%c0_12, %c0_13] : memref<1x2xf32, #tpu.memory_space<vmem>>, vector<1x1xf32>
    %27 = vector.broadcast %26 : vector<1x1xf32> to vector<1x128xf32>
    %28 = arith.mulf %16, %27 : vector<1x128xf32>
    %c0_14 = arith.constant 0 : index
    %c1_15 = arith.constant 1 : index
    %29 = vector.load %arg6[%c0_14, %c1_15] : memref<1x2xf32, #tpu.memory_space<vmem>>, vector<1x1xf32>
    %30 = vector.broadcast %29 : vector<1x1xf32> to vector<1x128xf32>
    %31 = arith.mulf %25, %30 : vector<1x128xf32>
    %32 = arith.addf %28, %31 : vector<1x128xf32>
    %c0_16 = arith.constant 0 : index
    %c0_17 = arith.constant 0 : index
    %33 = vector.load %arg7[%c0_16, %c0_17] : memref<1x1xf32, #tpu.memory_space<vmem>>, vector<1x1xf32>
    %34 = vector.broadcast %33 : vector<1x1xf32> to vector<1x128xf32>
    %35 = arith.addf %32, %34 : vector<1x128xf32>
    %36 = math.exp %35 : vector<1x128xf32>
    %c0_18 = arith.constant 0 : index
    %c0_19 = arith.constant 0 : index
    %37 = vector.load %arg8[%c0_18, %c0_19] : memref<1x128xf32, #tpu.memory_space<vmem>>, vector<1x128xf32>
    tpu.vector_store %arg8[%c0_18, %c0_19], %36 {strides = array<i32>} : memref<1x128xf32, #tpu.memory_space<vmem>>, vector<1x128xf32>,
    return
  }
  func.func @transform_0(%arg0: i32) -> (i32, i32) {
    %c0_i32 = arith.constant 0 : i32
    %c0_i32_0 = arith.constant 0 : i32
    return %arg0, %c0_i32 : i32, i32
  }
  func.func @transform_1(%arg0: i32) -> (i32, i32) {
    %c0_i32 = arith.constant 0 : i32
    %c0_i32_0 = arith.constant 0 : i32
    %c0_i32_1 = arith.constant 0 : i32
    return %c0_i32, %c0_i32_0 : i32, i32
  }
  func.func @transform_2(%arg0: i32) -> (i32, i32) {
    %c0_i32 = arith.constant 0 : i32
    %c0_i32_0 = arith.constant 0 : i32
    %c0_i32_1 = arith.constant 0 : i32
    return %c0_i32, %c0_i32_0 : i32, i32
  }
  func.func @transform_3(%arg0: i32) -> (i32, i32) {
    %c0_i32 = arith.constant 0 : i32
    %c0_i32_0 = arith.constant 0 : i32
    %c0_i32_1 = arith.constant 0 : i32
    return %c0_i32, %c0_i32_0 : i32, i32
  }
  func.func @transform_4(%arg0: i32) -> (i32, i32) {
    %c0_i32 = arith.constant 0 : i32
    %c0_i32_0 = arith.constant 0 : i32
    %c0_i32_1 = arith.constant 0 : i32
    return %c0_i32, %c0_i32_0 : i32, i32
  }
  func.func @transform_5(%arg0: i32) -> (i32, i32) {
    %c0_i32 = arith.constant 0 : i32
    %c0_i32_0 = arith.constant 0 : i32
    %c0_i32_1 = arith.constant 0 : i32
    return %c0_i32, %c0_i32_0 : i32, i32
  }
  func.func @transform_6(%arg0: i32) -> (i32, i32) {
    %c0_i32 = arith.constant 0 : i32
    %c0_i32_0 = arith.constant 0 : i32
    %c0_i32_1 = arith.constant 0 : i32
    return %c0_i32, %c0_i32_0 : i32, i32
  }
  func.func @transform_7(%arg0: i32) -> (i32, i32) {
    %c0_i32 = arith.constant 0 : i32
    %c0_i32_0 = arith.constant 0 : i32
    return %c0_i32, %arg0 : i32, i32
  }
}

</mosaic_0001>

<llo_original>
// kernel: tpu_custom_call.1
$region0: #{tpu_custom_call.1}
  #allocation0 [shape = 'u32[]', space=smem, size = 0x4, offset = 0x4, fixed_abs, tag = 'smem constant byte address 0x4 - core index']
  #allocation1 [shape = 'u32[144,128]{1,0:T(1,128)}', space=vmem, size = 0x12000, scoped, tag = 'internal scratch']
  #allocation2 [shape = 'f32[1,1]{1,0:T(1,128)S(1)}', space=vmem, size = 0x200, scoped, tag = 'scoped memory for tpu_custom_call.1']
  %s0 = inlined_call_operand.vmem [shape: f32[128,39], index: 0, kind: input, shape index: {}]
  %s1 = inlined_call_operand.vmem [shape: f32[25,39], index: 1, kind: input, shape index: {}]
  %s2 = inlined_call_operand.vmem [shape: f32[25,1], index: 2, kind: input, shape index: {}]
  %s3 = inlined_call_operand.vmem [shape: f32[25,2], index: 3, kind: input, shape index: {}]
  %s4 = inlined_call_operand.vmem [shape: f32[2,1], index: 4, kind: input, shape index: {}]
  %s5 = inlined_call_operand.vmem [shape: f32[1,2], index: 5, kind: input, shape index: {}]
  %s6 = inlined_call_operand.<no memory space> [shape: f32[1,1], index: 6, kind: input, shape index: {}]
  %s7 = inlined_call_operand.hbm [shape: f32[1,128], index: 7, kind: output, shape index: {}]
  %s8 = sld [smem:[#allocation0]]
  $region38: #{tpu_custom_call.1} parent=0
    _
  %s10 = ssub.s32 1, %s8
  %s11 = scalar_select 0, %s10, %s8
  %v12 = vstv %s6
  %13 = vst [vmem:[#allocation2] sm:$0x1] %v12
  $region1: #{tpu_custom_call.1} parent=0
    #allocation3 [shape = 'u8[512]{0}', space=vmem, size = 0x400, scoped, tag = 'output window, operand 0, single buffered']
    #allocation4 [shape = 's32[1]{0}', space=sflag, size = 0x4, scoped, tag = 'scoped memory for tpu_custom_call.1']
    %14 = vsyncpa [#allocation4], 0
    // Predicated region
    $region2: #{tpu_custom_call.1} parent=1 // pred_check
      _
    $region3: #{tpu_custom_call.1} parent=1 // pred_check_branch
      %16 = sbr.rel (0) target = $region5
    $region4: #{tpu_custom_call.1} parent=1 // pred_region
      _
    $region5: #{tpu_custom_call.1} parent=1 // pred_fallthru
      _
    // Predicated region
    $region6: #{tpu_custom_call.1} parent=1 // pred_check
      _
    $region7: #{tpu_custom_call.1} parent=1 // pred_check_branch
      %18 = sbr.rel (0) target = $region9
    $region8: #{tpu_custom_call.1} parent=1 // pred_region
      _
    $region9: #{tpu_custom_call.1} parent=1 // pred_fallthru
      _
    // Predicated region
    $region10: #{tpu_custom_call.1} parent=1 // pred_check
      _
    $region11: #{tpu_custom_call.1} parent=1 // pred_check_branch
      %20 = sbr.rel (0) target = $region13
    $region12: #{tpu_custom_call.1} parent=1 // pred_region
      _
    $region13: #{tpu_custom_call.1} parent=1 // pred_fallthru
      _
    // Predicated region
    $region14: #{tpu_custom_call.1} parent=1 // pred_check
      _
    $region15: #{tpu_custom_call.1} parent=1 // pred_check_branch
      %22 = sbr.rel (0) target = $region17
    $region16: #{tpu_custom_call.1} parent=1 // pred_region
      _
    $region17: #{tpu_custom_call.1} parent=1 // pred_fallthru
      _
    // Predicated region
    $region18: #{tpu_custom_call.1} parent=1 // pred_check
      _
    $region19: #{tpu_custom_call.1} parent=1 // pred_check_branch
      %24 = sbr.rel (0) target = $region21
    $region20: #{tpu_custom_call.1} parent=1 // pred_region
      _
    $region21: #{tpu_custom_call.1} parent=1 // pred_fallthru
      _
    // Predicated region
    $region22: #{tpu_custom_call.1} parent=1 // pred_check
      _
    $region23: #{tpu_custom_call.1} parent=1 // pred_check_branch
      %26 = sbr.rel (0) target = $region25
    $region24: #{tpu_custom_call.1} parent=1 // pred_region
      _
    $region25: #{tpu_custom_call.1} parent=1 // pred_fallthru
      _
    // Predicated region
    $region26: #{tpu_custom_call.1} parent=1 // pred_check
      _
    $region27: #{tpu_custom_call.1} parent=1 // pred_check_branch
      %28 = sbr.rel (0) target = $region29
    $region28: #{tpu_custom_call.1} parent=1 // pred_region
      _
    $region29: #{tpu_custom_call.1} parent=1 // pred_fallthru
      _
    %v29 = vld [vmem:[%s0] sm:$0xff]
    %v30 = vld [vmem:[%s0 + $0x8] sm:$0xff]
    %v31 = vld [vmem:[%s0 + $0x10] sm:$0xff]
    %v32 = vld [vmem:[%s0 + $0x18] sm:$0xff]
    %v33 = vld [vmem:[%s0 + $0x20] sm:$0xff]
    %v34 = vld [vmem:[%s0 + $0x28] sm:$0xff]
    %v35 = vld [vmem:[%s0 + $0x30] sm:$0xff]
    %v36 = vld [vmem:[%s0 + $0x38] sm:$0xff]
    %v37 = vld [vmem:[%s0 + $0x40] sm:$0xff]
    %v38 = vld [vmem:[%s0 + $0x48] sm:$0xff]
    %v39 = vld [vmem:[%s0 + $0x50] sm:$0xff]
    %v40 = vld [vmem:[%s0 + $0x58] sm:$0xff]
    %v41 = vld [vmem:[%s0 + $0x60] sm:$0xff]
    %v42 = vld [vmem:[%s0 + $0x68] sm:$0xff]
    %v43 = vld [vmem:[%s0 + $0x70] sm:$0xff]
    %v44 = vld [vmem:[%s0 + $0x78] sm:$0xff]
    %v45 = vld [vmem:[%s1] sm:$0xff]
    %v46 = vld [vmem:[%s1 + $0x8] sm:$0xff]
    %v47 = vld [vmem:[%s1 + $0x10] sm:$0xff]
    %v48 = vld [vmem:[%s1 + $0x18] sm:$0x1]
    %v49 = vld [vmem:[%s2] sm:$0xff]
    %v50 = vld [vmem:[%s2 + $0x8] sm:$0xff]
    %v51 = vld [vmem:[%s2 + $0x10] sm:$0xff]
    %v52 = vld [vmem:[%s2 + $0x18] sm:$0x1]
    %54 = vset.pattern.permute.xlu0 0
    %55 = vperm.xlu0 %54, %v49
    %v56 = vpop.permute.xlu0 %55
    %59 = vset.pattern.permute.xlu0 0
    %60 = vperm.xlu0 %59, %v50
    %v61 = vpop.permute.xlu0 %60
    %64 = vset.pattern.permute.xlu0 0
    %65 = vperm.xlu0 %64, %v51
    %v66 = vpop.permute.xlu0 %65
    %69 = vset.pattern.permute.xlu0 0
    %70 = vperm.xlu0 %69, %v52
    %v71 = vpop.permute.xlu0 %70
    %vm73 = vcmask 318464
    %v75 = vsel %vm73, %v45, 0
    %v78 = vsel %vm73, %v46, 0
    %v81 = vsel %vm73, %v47, 0
    %v84 = vsel %vm73, %v48, 0
    %v87 = vsel %vm73, %v29, 0
    %v90 = vsel %vm73, %v30, 0
    %v93 = vsel %vm73, %v31, 0
    %v96 = vsel %vm73, %v32, 0
    %v99 = vsel %vm73, %v33, 0
    %v102 = vsel %vm73, %v34, 0
    %v105 = vsel %vm73, %v35, 0
    %v108 = vsel %vm73, %v36, 0
    %v111 = vsel %vm73, %v37, 0
    %v114 = vsel %vm73, %v38, 0
    %v117 = vsel %vm73, %v39, 0
    %v120 = vsel %vm73, %v40, 0
    %v123 = vsel %vm73, %v41, 0
    %v126 = vsel %vm73, %v42, 0
    %v129 = vsel %vm73, %v43, 0
    %v132 = vsel %vm73, %v44, 0
    %134 = vmatprep.subr.mxu0 0.0
    %135 = vmatpush1.xpose.msra.mxu0 %v87
    %136 = vmatprep.subr.mxu0 0.0
    %137 = vmatpush1.xpose.msra.mxu0 %v90
    %138 = vmatprep.subr.mxu0 0.0
    %139 = vmatpush1.xpose.msra.mxu0 %v93
    %140 = vmatprep.subr.mxu0 0.0
    %141 = vmatpush1.xpose.msra.mxu0 %v96
    %142 = vmatprep.subr.mxu0 0.0
    %143 = vmatpush1.xpose.msra.mxu0 %v99
    %144 = vmatprep.subr.mxu0 0.0
    %145 = vmatpush1.xpose.msra.mxu0 %v102
    %146 = vmatprep.subr.mxu0 0.0
    %147 = vmatpush1.xpose.msra.mxu0 %v105
    %148 = vmatprep.subr.mxu0 0.0
    %149 = vmatpush1.xpose.msra.mxu0 %v108
    %150 = vmatprep.subr.mxu0 0.0
    %151 = vmatpush1.xpose.msra.mxu0 %v111
    %152 = vmatprep.subr.mxu0 0.0
    %153 = vmatpush1.xpose.msra.mxu0 %v114
    %154 = vmatprep.subr.mxu0 0.0
    %155 = vmatpush1.xpose.msra.mxu0 %v117
    %156 = vmatprep.subr.mxu0 0.0
    %157 = vmatpush1.xpose.msra.mxu0 %v120
    %158 = vmatprep.subr.mxu0 0.0
    %159 = vmatpush1.xpose.msra.mxu0 %v123
    %160 = vmatprep.subr.mxu0 0.0
    %161 = vmatpush1.xpose.msra.mxu0 %v126
    %162 = vmatprep.subr.mxu0 0.0
    %163 = vmatpush1.xpose.msra.mxu0 %v129
    %164 = vmatprep.subr.mxu0 0.0
    %165 = vmatpush1.xpose.msra.mxu0 %v132
    %166 = vmatprep.subr.mxu0 0.0
    %167 = vmatpush1.xpose.msra.mxu0 0.0
    %168 = vmatprep.subr.mxu0 0.0
    %169 = vmatpush1.xpose.msra.mxu0 0.0
    %170 = vmatprep.subr.mxu0 0.0
    %171 = vmatpush1.xpose.msra.mxu0 0.0
    %172 = vmatprep.subr.mxu0 0.0
    %173 = vmatpush1.xpose.msra.mxu0 0.0
    %174 = vmatprep.subr.mxu0 0.0
    %175 = vmatpush1.xpose.msra.mxu0 0.0
    %176 = vmatprep.subr.mxu0 0.0
    %177 = vmatpush1.xpose.msra.mxu0 0.0
    %178 = vmatprep.subr.mxu0 0.0
    %179 = vmatpush1.xpose.msra.mxu0 0.0
    %180 = vmatprep.subr.mxu0 0.0
    %181 = vmatpush1.xpose.msra.mxu0 0.0
    %182 = vmatprep.subr.mxu0 0.0
    %183 = vmatpush1.xpose.msra.mxu0 0.0
    %184 = vmatprep.subr.mxu0 0.0
    %185 = vmatpush1.xpose.msra.mxu0 0.0
    %186 = vmatprep.subr.mxu0 0.0
    %187 = vmatpush1.xpose.msra.mxu0 0.0
    %188 = vmatprep.subr.mxu0 0.0
    %189 = vmatpush1.xpose.msra.mxu0 0.0
    %190 = vmatprep.subr.mxu0 0.0
    %191 = vmatpush1.xpose.msra.mxu0 0.0
    %192 = vmatprep.subr.mxu0 0.0
    %193 = vmatpush1.xpose.msra.mxu0 0.0
    %194 = vmatprep.subr.mxu0 0.0
    %195 = vmatpush1.xpose.msra.mxu0 0.0
    %196 = vmatprep.subr.mxu0 0.0
    %197 = vmatpush1.xpose.msra.mxu0 0.0
    %198 = vmatprep.mubr.f32.mxu0 0.0
    %199 = vmatmul.mubr.f32.gmra.mrb[0].mxu0 %v75
    %v200 = vpop.f32.mrb[0].mxu0
    %v201 = vadd.f32 %v56, %v200
    %v202 = vpop.f32.mrb[0].mxu0
    %203 = vmatprep.mubr.f32.mxu0 0.0
    %204 = vmatmul.mubr.f32.gmra.mrb[0].mxu0 %v78
    %v205 = vpop.f32.mrb[0].mxu0
    %v206 = vadd.f32 %v61, %v205
    %v207 = vpop.f32.mrb[0].mxu0
    %208 = vmatprep.mubr.f32.mxu0 0.0
    %209 = vmatmul.mubr.f32.gmra.mrb[0].mxu0 %v81
    %v210 = vpop.f32.mrb[0].mxu0
    %v211 = vadd.f32 %v66, %v210
    %v212 = vpop.f32.mrb[0].mxu0
    %213 = vmatprep.mubr.f32.mxu0 0.0
    %214 = vmatmul.mubr.f32.gmra.mrb[0].mxu0 %v84
    %v215 = vpop.f32.mrb[0].mxu0
    %v216 = vadd.f32 %v71, %v215
    %v217 = vpop.f32.mrb[0].mxu0
    %218 = vdwg.mxu0
    %v219 = vtanh.pop %v201
    %v220 = vtanh.pop %v206
    %v221 = vtanh.pop %v211
    %v222 = vtanh.pop %v216
    %v223 = vld [vmem:[%s3] sm:$0xff]
    %v224 = vld [vmem:[%s3 + $0x8] sm:$0xff]
    %v225 = vld [vmem:[%s3 + $0x10] sm:$0xff]
    %v226 = vld [vmem:[%s3 + $0x18] sm:$0x1]
    %228 = vset.pattern.permute.xlu0 0
    %229 = vperm.xlu0 %228, %v223
    %v230 = vpop.permute.xlu0 %229
    %233 = vset.pattern.permute.xlu0 0
    %234 = vperm.xlu0 %233, %v224
    %v235 = vpop.permute.xlu0 %234
    %238 = vset.pattern.permute.xlu0 0
    %239 = vperm.xlu0 %238, %v225
    %v240 = vpop.permute.xlu0 %239
    %243 = vset.pattern.permute.xlu0 0
    %244 = vperm.xlu0 %243, %v226
    %v245 = vpop.permute.xlu0 %244
    %v247 = vmul.f32 %v230, %v219
    %v248 = vmul.f32 %v235, %v220
    %v249 = vmul.f32 %v240, %v221
    %v250 = vmul.f32 %v245, %v222
    %v251 = vadd.f32 %v247, %v248
    %v252 = vadd.f32 %v251, %v249
    %vm253 = vcmask 1040384
    %v254 = vsel %vm253, %v250, 0.0
    %v255 = vadd.f32 %v252, %v254
    %v256 = vrot.slane %v255, 4
    %v257 = vadd.f32 %v255, %v256
    %v258 = vrot.slane %v257, 2
    %v259 = vadd.f32 %v257, %v258
    %v260 = vrot.slane %v259, 1
    %v261 = vadd.f32 %v259, %v260
    %v262 = vld [vmem:[%s4] sm:$0x1]
    %264 = vset.pattern.permute.xlu0 0
    %265 = vperm.xlu0 %264, %v262
    %v266 = vpop.permute.xlu0 %265
    %v268 = vadd.f32 %v261, %v266
    %v269 = vtanh.pop %v268
    %270 = vset.pattern.permute.xlu0 1
    %271 = vperm.xlu0 %270, %v223
    %v272 = vpop.permute.xlu0 %271
    %274 = vset.pattern.permute.xlu0 1
    %275 = vperm.xlu0 %274, %v224
    %v276 = vpop.permute.xlu0 %275
    %278 = vset.pattern.permute.xlu0 1
    %279 = vperm.xlu0 %278, %v225
    %v280 = vpop.permute.xlu0 %279
    %282 = vset.pattern.permute.xlu0 1
    %283 = vperm.xlu0 %282, %v226
    %v284 = vpop.permute.xlu0 %283
    %v286 = vmul.f32 %v272, %v219
    %v287 = vmul.f32 %v276, %v220
    %v288 = vmul.f32 %v280, %v221
    %v289 = vmul.f32 %v284, %v222
    %v290 = vadd.f32 %v286, %v287
    %v291 = vadd.f32 %v290, %v288
    %v292 = vsel %vm253, %v289, 0.0
    %v293 = vadd.f32 %v291, %v292
    %v294 = vrot.slane %v293, 4
    %v295 = vadd.f32 %v293, %v294
    %v296 = vrot.slane %v295, 2
    %v297 = vadd.f32 %v295, %v296
    %v298 = vrot.slane %v297, 1
    %v299 = vadd.f32 %v297, %v298
    %v300 = vld [vmem:[%s4 + $0x1] sm:$0x1]
    %302 = vset.pattern.permute.xlu0 0
    %303 = vperm.xlu0 %302, %v300
    %v304 = vpop.permute.xlu0 %303
    %v306 = vadd.f32 %v299, %v304
    %v307 = vtanh.pop %v306
    %v308 = vld [vmem:[%s5] sm:$0x1]
    %310 = vset.pattern.permute.xlu0 0
    %311 = vperm.xlu0 %310, %v308
    %v312 = vpop.permute.xlu0 %311
    %v314 = vlaneseq
    %v315 = vshrl.u32 %v314, 7
    %v316 = vsub.s32 0, %v315
    %v317 = vrot.slane %v312, %v316
    %v318 = vmul.f32 %v269, %v317
    %319 = vset.pattern.permute.xlu0 1
    %320 = vperm.xlu0 %319, %v308
    %v321 = vpop.permute.xlu0 %320
    %v323 = vlaneseq
    %v324 = vshrl.u32 %v323, 7
    %v325 = vsub.s32 0, %v324
    %v326 = vrot.slane %v321, %v325
    %v327 = vmul.f32 %v307, %v326
    %v328 = vadd.f32 %v318, %v327
    %v329 = vld [vmem:[#allocation2] sm:$0x1]
    %331 = vset.pattern.permute.xlu0 0
    %332 = vperm.xlu0 %331, %v329
    %v333 = vpop.permute.xlu0 %332
    %v335 = vlaneseq
    %v336 = vshrl.u32 %v335, 7
    %v337 = vsub.s32 0, %v336
    %v338 = vrot.slane %v333, %v337
    %v339 = vadd.f32 %v328, %v338
    %v340 = vmul.f32 %v339, 1.442695
    %v341 = vpow.pop %v340
    %342 = vst [vmem:[#allocation3] sm:$0x1] %v341
    // Predicated region
    $region30: #{tpu_custom_call.1} parent=1 // pred_check
      _
    $region31: #{tpu_custom_call.1} parent=1 // pred_check_branch
      %344 = sbr.rel (0) target = $region33
    $region32: #{tpu_custom_call.1} parent=1 // pred_region
      %s346 = ssub.s32 16, 16
      %347 = vsyncadd [#allocation4], %s346
      %s349 = sshll.u32 [#allocation3], 4
      %s350 = int_to_ptr.vmem [resolvable:$true] %s349
      %352 = dma.vmem_to_hbm [thread:$0]  %s350, 16, %s7, [#allocation4]
    $region33: #{tpu_custom_call.1} parent=1 // pred_fallthru
      _
    // Predicated region
    $region34: #{tpu_custom_call.1} parent=1 // pred_check
      _
    $region35: #{tpu_custom_call.1} parent=1 // pred_check_branch
      %354 = sbr.rel (0) target = $region37
    $region36: #{tpu_custom_call.1} parent=1 // pred_region
      %355 = dma.done [#allocation4], 16
    $region37: #{tpu_custom_call.1} parent=1 // pred_fallthru
      _
    %356 = vsyncpa [#allocation4], 1

</llo_original>
